<compile_context>
chip_gen: v5e
topology: v5e:2x2
jax: 0.10.0
libtpu: 0.0.40
codegen_flags: <defaults>
</compile_context>

<pallas_src>
import functools

import numpy as np
import jax
import jax.numpy as jnp
from jax.experimental import pallas as pl
from jax.experimental.pallas import tpu as pltpu


def _round_up(x, m):
    return ((x + m - 1) // m) * m


def _vmem_physical_bytes():
    """Physical VMEM per core; conservative fallback if the query fails."""
    try:
        info = pltpu.get_tpu_info()
        cap = getattr(info, "vmem_capacity_bytes", None)
        if cap:
            return int(cap)
    except Exception:
        pass
    return 64 * 1024 * 1024  # v7x-sized fallback (safe lower bound for v5e/v6e)


def _pick_tile_and_vmem(batch, num_classes, itemsize):
    """Byte-based batch-tile sizing + explicit scoped-VMEM limit.

    Live set per row of a tile:
      2 x double-buffered native-dtype logits  (2 * itemsize * C)
      ~3 f32 tile-sized temporaries (z, exp(z)/where temp, one-hot mask)
      + small slack for labels / output / cls_w.
    """
    phys = _vmem_physical_bytes()
    vmem_limit = min(int(phys * 0.75), 96 * 1024 * 1024)   # ~48 MiB v7x, 96 MiB v5e/v6e
    usable = int(vmem_limit * 0.85)                          # headroom for compiler scratch

    per_row = num_classes * (2 * itemsize + 3 * 4) + 64
    tb = usable // per_row
    tb = min(tb, 16384)          # row cap (review: 8-16K), replaces old 1024 cap
    tb = (tb // 8) * 8           # sublane multiple

    if tb < 8:
        # TODO(synk): class-axis online-LSE path for vocab-scale num_classes.
        raise NotImplementedError(
            "num_classes too large for batch-only tiling on this chip; "
            "needs class-axis online-LSE tiling (TODO(synk)).")

    b_pad8 = _round_up(batch, 8)
    if tb >= b_pad8:
        if batch >= 256:
            # Whole batch fits in one tile: split into 2 tiles so both v7x
            # TensorCores get work on the "parallel" batch axis.
            tb = _round_up(-(-batch // 2), 8)
        else:
            tb = b_pad8
    return tb, vmem_limit


def _ce_cb_kernel(logits_ref, labels_ref, clsw_ref, out_ref, *, epsilon, num_classes):
    x = logits_ref[...]                                     # (TB, C) native dtype
    lbl = labels_ref[...]                                   # (TB, 1) int32; -1 on pad rows
    col = jax.lax.broadcasted_iota(jnp.int32, x.shape, 1)   # (TB, C) column ids
    hit = col == lbl                                        # one-hot mask (all-false on pad)

    # Row max on the native dtype; keep the f32 cast fused into the subtract so
    # no eager full-size f32 copy of the tile is materialized.
    m = jnp.max(x, axis=1, keepdims=True).astype(jnp.float32)        # (TB, 1)
    z = x.astype(jnp.float32) - m                                     # (TB, C) f32
    sum_z = jnp.sum(z, axis=1, keepdims=True)                         # (TB, 1)
    lse = jnp.log(jnp.sum(jnp.exp(z), axis=1, keepdims=True))         # (TB, 1)

    # In-kernel gathers on the already-resident tile (no HBM re-read):
    #   z_lbl = x[b, y_b] - m_b ;  w = cls_w[y_b]   (both 0 on padded rows)
    z_lbl = jnp.sum(jnp.where(hit, z, 0.0), axis=1, keepdims=True)            # (TB, 1)
    w = jnp.sum(jnp.where(hit, clsw_ref[...], 0.0), axis=1, keepdims=True)    # (TB, 1)

    # -w * sum_c smoothed_c * log_prob_c
    #   == -w * ((1-eps)*(z_lbl - lse) + (eps/C)*(sum_z - C*lse))
    per_sample = -w * (
        (1.0 - epsilon) * (z_lbl - lse)
        + (epsilon / num_classes) * (sum_z - num_classes * lse)
    )                                                                  # (TB, 1)

    # Per-tile partial sum, written as one fully aligned (8, 128) f32 vreg
    # (lane-dense, unmasked store; padded rows contribute exactly 0).
    out_ref[...] = jnp.full((1, 8, 128), jnp.sum(per_sample), dtype=jnp.float32)


def cross_entropy_cb(inputs, targets, samples_per_cls, beta, gamma,
                     num_classes, epsilon=0.1, tile_rows=None):
    """Class-balanced, label-smoothed cross entropy (reduction='mean').

    inputs:  (B, C) float32/bfloat16 logits
    targets: (B,)   int labels in [0, C)
    samples_per_cls: length-C sequence of sample counts
    tile_rows: optional override of the batch tile (testing), multiple of 8.
    """
    del gamma  # the reference module's forward never uses the focal term
    B, C = inputs.shape
    assert C == num_classes

    # Tiny per-class weight computation (compile-time glue, as in cal_weights).
    effective_num = 1.0 - np.power(beta, np.asarray(samples_per_cls, dtype=np.float64))
    weights = (1.0 - beta) / effective_num
    weights = weights / np.sum(weights) * num_classes
    cls_w = jnp.asarray(weights, dtype=jnp.float32).reshape(1, C)      # (1, C), kept resident

    itemsize = jnp.dtype(inputs.dtype).itemsize
    tb, vmem_limit = _pick_tile_and_vmem(B, C, itemsize)
    if tile_rows is not None:
        assert tile_rows % 8 == 0
        tb = min(tile_rows, _round_up(B, 8))

    b_pad = _round_up(B, tb)
    num_tiles = b_pad // tb

    labels2d = targets.astype(jnp.int32).reshape(B, 1)
    if b_pad != B:
        pad = b_pad - B
        inputs = jnp.pad(inputs, ((0, pad), (0, 0)))                       # finite zeros
        labels2d = jnp.pad(labels2d, ((0, pad), (0, 0)), constant_values=-1)  # no class match

    kernel = functools.partial(
        _ce_cb_kernel,
        epsilon=float(epsilon),
        num_classes=float(num_classes),
    )

    partials = pl.pallas_call(
        kernel,
        out_shape=jax.ShapeDtypeStruct((num_tiles, 8, 128), jnp.float32),
        grid=(num_tiles,),
        in_specs=[
            pl.BlockSpec((tb, C), lambda i: (i, 0)),   # logits tile (native dtype)
            pl.BlockSpec((tb, 1), lambda i: (i, 0)),   # labels (int32, -1 on padding)
            pl.BlockSpec((1, C), lambda i: (0, 0)),    # class weights (constant block, fetched once)
        ],
        out_specs=pl.BlockSpec((1, 8, 128), lambda i: (i, 0, 0)),
        compiler_params=pltpu.CompilerParams(
            dimension_semantics=("parallel",),
            vmem_limit_bytes=vmem_limit,
        ),
    )(inputs, labels2d, cls_w)

    # Each tile wrote its partial sum broadcast over one (8,128) vreg; take one
    # element per tile.  Padded rows contributed 0, so divide by the true B.
    return jnp.sum(partials[:, 0, 0]) / B


def _reference(inputs, targets, samples_per_cls, beta, num_classes, epsilon):
    # Pure-JAX reference mirroring the PyTorch forward.
    log_probs = jax.nn.log_softmax(inputs.astype(jnp.float32), axis=1)
    one_hot = jax.nn.one_hot(targets, num_classes, dtype=jnp.float32)
    smoothed = (1.0 - epsilon) * one_hot + epsilon / num_classes
    effective_num = 1.0 - np.power(beta, np.asarray(samples_per_cls, dtype=np.float64))
    w = (1.0 - beta) / effective_num
    w = w / np.sum(w) * num_classes
    w = jnp.asarray(w, dtype=jnp.float32)
    sample_w = (one_hot * w[None, :]).sum(axis=1, keepdims=True)
    loss = (-sample_w * smoothed * log_probs).sum(axis=1)
    return loss.mean()


if __name__ == "__main__":
    key = jax.random.PRNGKey(0)
    epsilon = 0.1
    beta = 0.999
    gamma = 2.0

    # Case 1: small shape matching the module's typical use (single tile).
    batch, num_classes = 8, 32
    k1, k2, k3, k4, k5, k6 = jax.random.split(key, 6)
    logits = jax.random.normal(k1, (batch, num_classes), dtype=jnp.float32)
    labels = jax.random.randint(k2, (batch,), 0, num_classes, dtype=jnp.int32)
    samples_per_cls = list(range(10, 10 + num_classes))
    loss = cross_entropy_cb(logits, labels, samples_per_cls, beta, gamma,
                            num_classes=num_classes, epsilon=epsilon)
    loss = jax.block_until_ready(loss)
    ref = _reference(logits, labels, samples_per_cls, beta, num_classes, epsilon)
    np.testing.assert_allclose(np.asarray(loss), np.asarray(ref), rtol=1e-5, atol=1e-5)

    # Case 2: batch not a multiple of 8 (exercises the padding path, single tile).
    batch2, num_classes2 = 12, 160
    logits2 = jax.random.normal(k3, (batch2, num_classes2), dtype=jnp.float32)
    labels2 = jax.random.randint(k4, (batch2,), 0, num_classes2, dtype=jnp.int32)
    samples_per_cls2 = list(range(5, 5 + num_classes2))
    loss2 = cross_entropy_cb(logits2, labels2, samples_per_cls2, beta, gamma,
                             num_classes=num_classes2, epsilon=epsilon)
    loss2 = jax.block_until_ready(loss2)
    ref2 = _reference(logits2, labels2, samples_per_cls2, beta, num_classes2, epsilon)
    np.testing.assert_allclose(np.asarray(loss2), np.asarray(ref2), rtol=1e-5, atol=1e-5)

    # Case 3: bf16 logits, forced small tile -> multiple tiles + padding rows.
    batch3, num_classes3 = 20, 160
    logits3 = jax.random.normal(k5, (batch3, num_classes3), dtype=jnp.bfloat16)
    labels3 = jax.random.randint(k6, (batch3,), 0, num_classes3, dtype=jnp.int32)
    samples_per_cls3 = list(range(3, 3 + num_classes3))
    loss3 = cross_entropy_cb(logits3, labels3, samples_per_cls3, beta, gamma,
                             num_classes=num_classes3, epsilon=epsilon, tile_rows=8)
    loss3 = jax.block_until_ready(loss3)
    ref3 = _reference(logits3, labels3, samples_per_cls3, beta, num_classes3, epsilon)
    np.testing.assert_allclose(np.asarray(loss3), np.asarray(ref3), rtol=1e-4, atol=1e-4)

    # Case 4: batch >= 256 -> automatic 2-tile split (megacore-friendly path).
    batch4, num_classes4 = 512, 256
    ka, kb = jax.random.split(k1)
    logits4 = jax.random.normal(ka, (batch4, num_classes4), dtype=jnp.float32)
    labels4 = jax.random.randint(kb, (batch4,), 0, num_classes4, dtype=jnp.int32)
    samples_per_cls4 = list(range(2, 2 + num_classes4))
    loss4 = cross_entropy_cb(logits4, labels4, samples_per_cls4, beta, gamma,
                             num_classes=num_classes4, epsilon=epsilon)
    loss4 = jax.block_until_ready(loss4)
    ref4 = _reference(logits4, labels4, samples_per_cls4, beta, num_classes4, epsilon)
    np.testing.assert_allclose(np.asarray(loss4), np.asarray(ref4), rtol=1e-5, atol=1e-5)

    print("KERNEL_OK")
</pallas_src>

<mosaic_0001>
module attributes {stable_mosaic.version = 11 : i64} {
  func.func @_ce_cb_kernel(%arg0: i32, %arg1: memref<8x32xf32, #tpu.memory_space<vmem>>, %arg2: memref<8x1xi32, #tpu.memory_space<vmem>>, %arg3: memref<1x32xf32, #tpu.memory_space<vmem>>, %arg4: memref<1x8x128xf32, #tpu.memory_space<vmem>>) attributes {dimension_semantics = [#tpu.dimension_semantics<parallel>], iteration_bounds = array<i64: 1>, scalar_prefetch = 0 : i64, scratch_operands = 0 : i64, tpu.core_type = #tpu.core_type<tc>, window_params = [{transform_indices = @transform_0, window_bounds = array<i64: 8, 32>}, {transform_indices = @transform_1, window_bounds = array<i64: 8, 1>}, {pipeline_mode = #tpu.pipeline_mode<synchronous>, transform_indices = @transform_2, window_bounds = array<i64: 1, 32>}, {transform_indices = @transform_3, window_bounds = array<i64: 1, 8, 128>}]} {
    %c0 = arith.constant 0 : index
    %c0_0 = arith.constant 0 : index
    %0 = vector.load %arg1[%c0, %c0_0] : memref<8x32xf32, #tpu.memory_space<vmem>>, vector<8x32xf32>
    %c0_1 = arith.constant 0 : index
    %c0_2 = arith.constant 0 : index
    %1 = vector.load %arg2[%c0_1, %c0_2] : memref<8x1xi32, #tpu.memory_space<vmem>>, vector<8x1xi32>
    %2 = tpu.iota {dimensions = array<i32: 1>} : vector<8x32xi32>
    %3 = vector.broadcast %1 : vector<8x1xi32> to vector<8x32xi32>
    %4 = arith.cmpi eq, %2, %3 : vector<8x32xi32>
    %cst = arith.constant dense<0xFF800000> : vector<8xf32>
    %5 = vector.multi_reduction <maximumf>, %0, %cst [1] : vector<8x32xf32> to vector<8xf32>
    %6 = vector.shape_cast %5 : vector<8xf32> to vector<8x1xf32>
    %7 = vector.broadcast %6 : vector<8x1xf32> to vector<8x32xf32>
    %8 = arith.subf %0, %7 : vector<8x32xf32>
    %cst_3 = arith.constant dense<0.000000e+00> : vector<8xf32>
    %9 = vector.multi_reduction <add>, %8, %cst_3 [1] : vector<8x32xf32> to vector<8xf32>
    %10 = vector.shape_cast %9 : vector<8xf32> to vector<8x1xf32>
    %11 = math.exp %8 : vector<8x32xf32>
    %cst_4 = arith.constant dense<0.000000e+00> : vector<8xf32>
    %12 = vector.multi_reduction <add>, %11, %cst_4 [1] : vector<8x32xf32> to vector<8xf32>
    %13 = vector.shape_cast %12 : vector<8xf32> to vector<8x1xf32>
    %14 = math.log %13 : vector<8x1xf32>
    %cst_5 = arith.constant 0.000000e+00 : f32
    %15 = vector.broadcast %cst_5 : f32 to vector<8x32xf32>
    %16 = arith.select %4, %8, %15 : vector<8x32xi1>, vector<8x32xf32>
    %cst_6 = arith.constant dense<0.000000e+00> : vector<8xf32>
    %17 = vector.multi_reduction <add>, %16, %cst_6 [1] : vector<8x32xf32> to vector<8xf32>
    %18 = vector.shape_cast %17 : vector<8xf32> to vector<8x1xf32>
    %c0_7 = arith.constant 0 : index
    %c0_8 = arith.constant 0 : index
    %19 = vector.load %arg3[%c0_7, %c0_8] : memref<1x32xf32, #tpu.memory_space<vmem>>, vector<1x32xf32>
    %cst_9 = arith.constant 0.000000e+00 : f32
    %20 = vector.shape_cast %19 : vector<1x32xf32> to vector<1x32xf32>
    %21 = vector.broadcast %20 : vector<1x32xf32> to vector<8x32xf32>
    %22 = vector.broadcast %cst_9 : f32 to vector<8x32xf32>
    %23 = arith.select %4, %21, %22 : vector<8x32xi1>, vector<8x32xf32>
    %cst_10 = arith.constant dense<0.000000e+00> : vector<8xf32>
    %24 = vector.multi_reduction <add>, %23, %cst_10 [1] : vector<8x32xf32> to vector<8xf32>
    %25 = vector.shape_cast %24 : vector<8xf32> to vector<8x1xf32>
    %cst_11 = arith.constant 0.000000e+00 : f32
    %26 = vector.broadcast %cst_11 : f32 to vector<8x1xf32>
    %27 = arith.subf %26, %25 : vector<8x1xf32>
    %28 = arith.subf %18, %14 : vector<8x1xf32>
    %cst_12 = arith.constant 0.899999976 : f32
    %29 = vector.broadcast %cst_12 : f32 to vector<8x1xf32>
    %30 = arith.mulf %29, %28 : vector<8x1xf32>
    %cst_13 = arith.constant 3.200000e+01 : f32
    %31 = vector.broadcast %cst_13 : f32 to vector<8x1xf32>
    %32 = arith.mulf %31, %14 : vector<8x1xf32>
    %33 = arith.subf %10, %32 : vector<8x1xf32>
    %cst_14 = arith.constant 3.125000e-03 : f32
    %34 = vector.broadcast %cst_14 : f32 to vector<8x1xf32>
    %35 = arith.mulf %34, %33 : vector<8x1xf32>
    %36 = arith.addf %30, %35 : vector<8x1xf32>
    %37 = arith.mulf %27, %36 : vector<8x1xf32>
    %38 = vector.shape_cast %37 : vector<8x1xf32> to vector<1x8x1xf32>
    %cst_15 = arith.constant dense<0.000000e+00> : vector<1xf32>
    %39 = vector.multi_reduction <add>, %38, %cst_15 [1, 2] : vector<1x8x1xf32> to vector<1xf32>
    %40 = vector.shape_cast %39 : vector<1xf32> to vector<1x1x1xf32>
    %41 = vector.extract %40[0, 0, 0] : f32 from vector<1x1x1xf32>
    %42 = vector.broadcast %41 : f32 to vector<1x8x128xf32>
    %c0_16 = arith.constant 0 : index
    %c0_17 = arith.constant 0 : index
    %c0_18 = arith.constant 0 : index
    %43 = vector.load %arg4[%c0_16, %c0_17, %c0_18] : memref<1x8x128xf32, #tpu.memory_space<vmem>>, vector<1x8x128xf32>
    tpu.vector_store %arg4[%c0_16, %c0_17, %c0_18], %42 {strides = array<i32>} : memref<1x8x128xf32, #tpu.memory_space<vmem>>, vector<1x8x128xf32>,
    return
  }
  func.func @transform_0(%arg0: i32) -> (i32, i32) {
    %c0_i32 = arith.constant 0 : i32
    %c0_i32_0 = arith.constant 0 : i32
    return %arg0, %c0_i32 : i32, i32
  }
  func.func @transform_1(%arg0: i32) -> (i32, i32) {
    %c0_i32 = arith.constant 0 : i32
    %c0_i32_0 = arith.constant 0 : i32
    return %arg0, %c0_i32 : i32, i32
  }
  func.func @transform_2(%arg0: i32) -> (i32, i32) {
    %c0_i32 = arith.constant 0 : i32
    %c0_i32_0 = arith.constant 0 : i32
    %c0_i32_1 = arith.constant 0 : i32
    return %c0_i32, %c0_i32_0 : i32, i32
  }
  func.func @transform_3(%arg0: i32) -> (i32, i32, i32) {
    %c0_i32 = arith.constant 0 : i32
    %c0_i32_0 = arith.constant 0 : i32
    %c0_i32_1 = arith.constant 0 : i32
    return %arg0, %c0_i32, %c0_i32_0 : i32, i32, i32
  }
}

</mosaic_0001>

<llo_original>
// kernel: tpu_custom_call.1
$region0: #{tpu_custom_call.1}
  #allocation0 [shape = 'u32[]', space=smem, size = 0x4, offset = 0x4, fixed_abs, tag = 'smem constant byte address 0x4 - core index']
  #allocation1 [shape = 'u32[72,128]{1,0:T(1,128)}', space=vmem, size = 0x9000, scoped, tag = 'internal scratch']
  %s0 = inlined_call_operand.vmem [shape: f32[8,32], index: 0, kind: input, shape index: {}]
  %s1 = inlined_call_operand.vmem [shape: s32[8,1], index: 1, kind: input, shape index: {}]
  %s2 = inlined_call_operand.vmem [shape: f32[1,32], index: 2, kind: input, shape index: {}]
  %s3 = inlined_call_operand.hbm [shape: f32[1,8,128], index: 3, kind: output, shape index: {}]
  %s4 = sld [smem:[#allocation0]]
  $region22: #{tpu_custom_call.1} parent=0
    _
  %s6 = ssub.s32 1, %s4
  %s7 = scalar_select 0, %s6, %s4
  $region1: #{tpu_custom_call.1} parent=0
    #allocation2 [shape = 'u8[4096]{0}', space=vmem, size = 0x1000, scoped, tag = 'output window, operand 0, single buffered']
    #allocation3 [shape = 's32[1]{0}', space=sflag, size = 0x4, scoped, tag = 'scoped memory for tpu_custom_call.1']
    %8 = vsyncpa [#allocation3], 0
    // Predicated region
    $region2: #{tpu_custom_call.1} parent=1 // pred_check
      _
    $region3: #{tpu_custom_call.1} parent=1 // pred_check_branch
      %10 = sbr.rel (0) target = $region5
    $region4: #{tpu_custom_call.1} parent=1 // pred_region
      _
    $region5: #{tpu_custom_call.1} parent=1 // pred_fallthru
      _
    // Predicated region
    $region6: #{tpu_custom_call.1} parent=1 // pred_check
      _
    $region7: #{tpu_custom_call.1} parent=1 // pred_check_branch
      %12 = sbr.rel (0) target = $region9
    $region8: #{tpu_custom_call.1} parent=1 // pred_region
      _
    $region9: #{tpu_custom_call.1} parent=1 // pred_fallthru
      _
    // Predicated region
    $region10: #{tpu_custom_call.1} parent=1 // pred_check
      _
    $region11: #{tpu_custom_call.1} parent=1 // pred_check_branch
      %14 = sbr.rel (0) target = $region13
    $region12: #{tpu_custom_call.1} parent=1 // pred_region
      _
    $region13: #{tpu_custom_call.1} parent=1 // pred_fallthru
      _
    %v15 = vld [vmem:[%s0] sm:$0xff]
    %v16 = vld [vmem:[%s1] sm:$0xff]
    %v17 = vlaneseq
    %v18 = vand.u32 %v17, 127
    %19 = vset.pattern.permute.xlu0 0
    %20 = vperm.xlu0 %19, %v16
    %v21 = vpop.permute.xlu0 %20
    %vm22 = vcmp.eq.s32.totalorder %v18, %v21
    %vm23 = vcmask 261120
    %v24 = vsel %vm23, %v15, -inf
    %25 = vmax.xlane.f32.xlu0 %v24
    %v26 = vpop.xlane.xlu0 %25
    %v27 = vsub.f32 %v15, %v26
    %v28 = vsel %vm23, %v27, 0.0
    %29 = vadd.xlane.f32.xlu0 %v28
    %v30 = vpop.xlane.xlu0 %29
    %v31 = vmul.f32 %v27, 1.442695
    %v32 = vpow.pop %v31
    %v33 = vsel %vm23, %v32, 0.0
    %34 = vadd.xlane.f32.xlu0 %v33
    %v35 = vpop.xlane.xlu0 %34
    %v36 = vlog2.pop %v35
    %v37 = vmul.f32 %v36, 0.6931472
    %v38 = vsel %vm22, %v27, 0.0
    %v39 = vsel %vm23, %v38, 0.0
    %40 = vadd.xlane.f32.xlu0 %v39
    %v41 = vpop.xlane.xlu0 %40
    %v42 = vld [vmem:[%s2] sm:$0x1]
    %v44 = vperm.slane %v42, 0
    %v46 = vsel %vm22, %v44, 0.0
    %v47 = vsel %vm23, %v46, 0.0
    %48 = vadd.xlane.f32.xlu0 %v47
    %v49 = vpop.xlane.xlu0 %48
    %v50 = vsub.f32 0.0, %v49
    %v51 = vsub.f32 %v41, %v37
    %v52 = vmul.f32 %v51, 0.9
    %v53 = vmul.f32 %v37, 32.0
    %v54 = vsub.f32 %v30, %v53
    %v55 = vmul.f32 %v54, 0.003125
    %v56 = vadd.f32 %v52, %v55
    %v57 = vmul.f32 %v50, %v56
    %vm58 = vcmask 7168
    %v59 = vsel %vm58, %v57, 0.0
    %60 = vadd.xlane.f32.xlu0 %v59
    %v61 = vpop.xlane.xlu0 %60
    %v62 = vrot.slane %v61, 4
    %v63 = vadd.f32 %v61, %v62
    %v64 = vrot.slane %v63, 2
    %v65 = vadd.f32 %v63, %v64
    %v66 = vrot.slane %v65, 1
    %v67 = vadd.f32 %v65, %v66
    %s68 = vtos %v67
    %v69 = vstv %s68
    %70 = vst [vmem:[#allocation2] sm:$0xff] %v69
    // Predicated region
    $region14: #{tpu_custom_call.1} parent=1 // pred_check
      _
    $region15: #{tpu_custom_call.1} parent=1 // pred_check_branch
      %72 = sbr.rel (0) target = $region17
    $region16: #{tpu_custom_call.1} parent=1 // pred_region
      %74 = vsyncadd [#allocation3], 0
      %s76 = sshll.u32 [#allocation2], 4
      %s77 = int_to_ptr.vmem [resolvable:$true] %s76
      %s78 = sshll.u32 %s3, 4
      %s79 = int_to_ptr.hbm [resolvable:$true] %s78
      %81 = dma.vmem_to_hbm [thread:$0]  %s77, 128, %s79, [#allocation3]
    $region17: #{tpu_custom_call.1} parent=1 // pred_fallthru
      _
    // Predicated region
    $region18: #{tpu_custom_call.1} parent=1 // pred_check
      _
    $region19: #{tpu_custom_call.1} parent=1 // pred_check_branch
      %83 = sbr.rel (0) target = $region21
    $region20: #{tpu_custom_call.1} parent=1 // pred_region
      %85 = dma.done [#allocation3], 128
    $region21: #{tpu_custom_call.1} parent=1 // pred_fallthru
      _
    %86 = vsyncpa [#allocation3], 1

</llo_original>
